<compile_context>
chip_gen: v7x
topology: tpu7x:2x2x1
jax: 0.10.0
libtpu: 0.0.40
codegen_flags: <defaults>
</compile_context>

<pallas_src>
import functools

import jax
import jax.numpy as jnp
from jax.experimental import pallas as pl
from jax.experimental.pallas import tpu as pltpu


def _clip_loss_kernel(img_ref, txt_ref, loss_ref,
                      col_max_ref, col_sum_ref, acc_ref,
                      *, inv_temp, denom, bounded):
    i = pl.program_id(0)
    tm = img_ref.shape[0]

    @pl.when(i == 0)
    def _init():
        col_max_ref[...] = jnp.full_like(col_max_ref, -jnp.inf)
        col_sum_ref[...] = jnp.zeros_like(col_sum_ref)
        acc_ref[...] = jnp.zeros_like(acc_ref)

    inv_t = jnp.float32(inv_temp)

    img = img_ref[...]                                   # [tm, d] (input dtype)
    txt = txt_ref[...]                                   # [b,  d] (input dtype)

    # logits_raw[r, c] = <img[r], txt[c]> ; contraction on the last dim of both
    # operands (same dimension_numbers as the Pallas flash-attention kernel),
    # so Mosaic feeds the MXU without an explicit transpose of the resident
    # text block.  f32 accumulation regardless of operand dtype.
    logits = jax.lax.dot_general(
        img, txt,
        dimension_numbers=(((1,), (1,)), ((), ())),
        preferred_element_type=jnp.float32)              # [tm, b] f32
    # Temperature applied to the f32 logits (one VPU pass) — keeps bf16 inputs
    # from being rounded a second time by a pre-scale in the input dtype.
    logits = logits * inv_t

    # Diagonal of this row tile, recomputed on the VPU from the same operands
    # the MXU consumed: diag[r] = <img[r], txt[i*tm + r]> / temperature.
    # (Accumulation order differs slightly from the MXU diagonal; this is
    # intentional — do NOT replace it with an O(b^2) iota mask.)
    row0 = pl.multiple_of(i * tm, tm)
    txt_diag = txt_ref[pl.ds(row0, tm), :]               # [tm, d]
    diag = inv_t * jnp.sum(img.astype(jnp.float32) * txt_diag.astype(jnp.float32),
                           axis=1, keepdims=True)        # [tm, 1]

    if bounded:
        # L2-normalized embeddings => |logits| <= 1/temperature, so a single
        # constant shift is numerically safe: ONE [tm, b] exp pass, no row /
        # column max reductions and no online rescale.
        shift = jnp.float32(inv_temp)
        e = jnp.exp(logits - shift)                      # [tm, b]
        row_sum = jnp.sum(e, axis=1, keepdims=True)      # [tm, 1]
        acc_ref[...] += jnp.sum(shift + jnp.log(row_sum) - 2.0 * diag)
        col_sum_ref[...] += jnp.sum(e, axis=0, keepdims=True)
    else:
        # General path (arbitrary-scale logits): per-row max for the row CE and
        # an online (max, sum) column softmax across row tiles.
        row_max = jnp.max(logits, axis=1, keepdims=True)                  # [tm,1]
        row_sum = jnp.sum(jnp.exp(logits - row_max), axis=1, keepdims=True)
        acc_ref[...] += jnp.sum(row_max + jnp.log(row_sum) - 2.0 * diag)

        tile_col_max = jnp.max(logits, axis=0, keepdims=True)             # [1, b]
        new_max = jnp.maximum(col_max_ref[...], tile_col_max)
        col_sum_ref[...] = (col_sum_ref[...] * jnp.exp(col_max_ref[...] - new_max)
                            + jnp.sum(jnp.exp(logits - new_max), axis=0,
                                      keepdims=True))
        col_max_ref[...] = new_max

    @pl.when(i == pl.num_programs(0) - 1)
    def _finalize():
        if bounded:
            col_lse = jnp.float32(inv_temp) + jnp.log(col_sum_ref[...])   # [1, b]
        else:
            col_lse = col_max_ref[...] + jnp.log(col_sum_ref[...])        # [1, b]
        loss_ref[...] = (acc_ref[...] + jnp.sum(col_lse)) / jnp.float32(denom)


def _tpu_vmem_capacity_bytes():
    try:
        return int(pltpu.get_tpu_info().vmem_capacity_bytes)
    except Exception:
        return None


def _vmem_limit_bytes(vmem_capacity):
    if vmem_capacity is None:
        return None                     # fall back to the Mosaic default
    # ~25% headroom for Mosaic internal scratch + the [tm, b] intermediates
    # (=> ~48 MiB on v7x, ~96 MiB on v5e/v6e).
    return int(vmem_capacity * 3 // 4)


def _row_tile_target(vmem_capacity):
    # Bigger tiles amortize the per-step overhead; 512 only where VMEM allows
    # (v5e/v6e: 128 MiB).  256 on v7x (64 MiB) / unknown.
    if vmem_capacity is not None and vmem_capacity >= 100 * 1024 * 1024:
        return 512
    return 256


def _pick_row_tile(b, target):
    """Largest multiple-of-8 row tile <= target that divides b."""
    tm = (min(target, b) // 8) * 8
    while tm >= 8:
        if b % tm == 0:
            return tm
        tm -= 8
    return b


def _build_clip_call(kernel, b, d, tm, single_buffer_text,
                     vmem_limit_bytes, cost_estimate):
    if single_buffer_text:
        # Constant index map -> the second pipeline buffer is pure VMEM waste.
        txt_spec = pl.BlockSpec((b, d), lambda i: (0, 0),
                                pipeline_mode=pl.Buffered(1))
    else:
        txt_spec = pl.BlockSpec((b, d), lambda i: (0, 0))
    return pl.pallas_call(
        kernel,
        out_shape=jax.ShapeDtypeStruct((1, 1), jnp.float32),
        grid_spec=pltpu.PrefetchScalarGridSpec(
            num_scalar_prefetch=0,
            grid=(b // tm,),
            in_specs=[
                pl.BlockSpec((tm, d), lambda i: (i, 0)),   # image rows: pipelined
                txt_spec,                                  # text: VMEM resident
            ],
            out_specs=pl.BlockSpec((1, 1), lambda i: (0, 0)),
            scratch_shapes=[
                pltpu.VMEM((1, b), jnp.float32),   # running column max (general path)
                pltpu.VMEM((1, b), jnp.float32),   # running column sum(exp)
                pltpu.VMEM((1, 1), jnp.float32),   # running row-CE partial
            ],
        ),
        compiler_params=pltpu.CompilerParams(
            # Column stats / acc are carried serially across row tiles.
            dimension_semantics=("arbitrary",),
            vmem_limit_bytes=vmem_limit_bytes,
        ),
        cost_estimate=cost_estimate,
    )


def clip_loss(image_embeddings, text_embeddings, temperature,
              reduction="mean", normalized_embeddings=False,
              mxu_dtype=None, block_rows=None):
    """Pallas implementation of ClipLoss.forward.

    normalized_embeddings=True enables the single-exp fast path (valid when
    the embeddings are L2-normalized, i.e. |logits| <= 1/temperature).
    mxu_dtype=jnp.bfloat16 runs the matmul on the bf16 MXU (f32 accumulation).
    """
    if reduction not in ("mean", "sum"):
        # TODO(synk): reduction=None (per-sample vector) needs a [b] output with
        # the column-LSE part written at finalize; not wired up.
        raise NotImplementedError("reduction must be 'mean' or 'sum'")
    b, d = image_embeddings.shape
    assert text_embeddings.shape == (b, d)
    assert image_embeddings.dtype == text_embeddings.dtype
    if b % 8:
        # TODO(synk): pad the batch to a multiple of 8 and mask pad logits to
        # -inf instead of rejecting awkward batch sizes.
        raise NotImplementedError("batch must be a multiple of 8")

    # Optional low-precision MXU path: cast ONCE in the wrapper (halves the
    # resident-text VMEM footprint and the image-tile HBM traffic).
    if mxu_dtype is not None and image_embeddings.dtype != mxu_dtype:
        image_embeddings = image_embeddings.astype(mxu_dtype)
        text_embeddings = text_embeddings.astype(mxu_dtype)

    vmem_cap = _tpu_vmem_capacity_bytes()
    if block_rows is None:
        tm = _pick_row_tile(b, _row_tile_target(vmem_cap))
    else:
        assert block_rows % 8 == 0 and b % block_rows == 0
        tm = block_rows

    inv_temp = 1.0 / float(temperature)
    # The constant-shift fast path needs exp(-2/temperature) to stay in f32
    # range; otherwise fall back to the robust online-max path.
    bounded = bool(normalized_embeddings) and (2.0 * inv_temp) < 80.0

    kernel = functools.partial(
        _clip_loss_kernel,
        inv_temp=inv_temp,
        denom=(2.0 * b if reduction == "mean" else 1.0),
        bounded=bounded)

    itemsize = jnp.dtype(image_embeddings.dtype).itemsize
    cost = pl.CostEstimate(
        flops=2 * b * b * d,
        transcendentals=(b * b if bounded else 2 * b * b),
        bytes_accessed=2 * b * d * itemsize + 2 * b * 4 + 4)

    vmem_limit = _vmem_limit_bytes(vmem_cap)

    # TODO(synk): for very large b*d, tile the resident text block over columns
    # (2-D grid with per-column-tile online stats) — needed earliest on v7x's
    # 64 MiB VMEM.
    # TODO(synk): on v7x, split the row tiles across the two TensorCores
    # (core_map / CORE_PARALLEL) with a tiny cross-core merge of the partials.

    out, err = None, None
    for single_buffer_text in (True, False):
        try:
            out = _build_clip_call(kernel, b, d, tm, single_buffer_text,
                                   vmem_limit, cost)(
                image_embeddings, text_embeddings)
            break
        except Exception as e:    # pl.Buffered(1) unsupported -> plain double buffer
            err = e
    if out is None:
        raise err
    return out[0, 0]


def _clip_loss_ref(image_embeddings, text_embeddings, temperature):
    # Pure-JAX reference mirroring the PyTorch module (f32, highest precision).
    logits = jax.lax.dot_general(
        image_embeddings.astype(jnp.float32), text_embeddings.astype(jnp.float32),
        dimension_numbers=(((1,), (1,)), ((), ())),
        precision=jax.lax.Precision.HIGHEST) / temperature
    labels = jnp.arange(logits.shape[0])
    lse_rows = jax.scipy.special.logsumexp(logits, axis=1)
    lse_cols = jax.scipy.special.logsumexp(logits, axis=0)
    diag = logits[labels, labels]
    total = (lse_rows - diag) + (lse_cols - diag)
    return total.sum() / (2.0 * logits.shape[0])


if __name__ == "__main__":
    key = jax.random.PRNGKey(0)
    k1, k2, k3, k4, k5, k6 = jax.random.split(key, 6)
    temperature = 0.07

    # 1) Small f32 case, general (online-max) path, single tile; mean + sum.
    b1, d1 = 8, 32
    img1 = jax.random.normal(k1, (b1, d1), dtype=jnp.float32)
    txt1 = jax.random.normal(k2, (b1, d1), dtype=jnp.float32)
    out1 = jax.block_until_ready(clip_loss(img1, txt1, temperature))
    ref1 = _clip_loss_ref(img1, txt1, temperature)
    assert jnp.allclose(out1, ref1, rtol=1e-3, atol=1e-3), (out1, ref1)
    out1s = jax.block_until_ready(clip_loss(img1, txt1, temperature, reduction="sum"))
    assert jnp.allclose(out1s, ref1 * 2.0 * b1, rtol=1e-3, atol=1e-3), (out1s, ref1)

    # 2) L2-normalized embeddings, bf16 MXU, single-exp fast path, multi-tile.
    b2, d2 = 512, 64
    img2 = jax.random.normal(k3, (b2, d2), dtype=jnp.float32)
    txt2 = jax.random.normal(k4, (b2, d2), dtype=jnp.float32)
    img2 = img2 / jnp.linalg.norm(img2, axis=1, keepdims=True)
    txt2 = txt2 / jnp.linalg.norm(txt2, axis=1, keepdims=True)
    out2 = jax.block_until_ready(
        clip_loss(img2, txt2, temperature, normalized_embeddings=True,
                  mxu_dtype=jnp.bfloat16, block_rows=128))
    ref2 = _clip_loss_ref(img2, txt2, temperature)
    assert jnp.allclose(out2, ref2, rtol=1e-2, atol=1e-3), (out2, ref2)

    # 3) Unnormalized f32, general path, multi-tile (online column softmax).
    b3, d3 = 512, 64
    img3 = jax.random.normal(k5, (b3, d3), dtype=jnp.float32)
    txt3 = jax.random.normal(k6, (b3, d3), dtype=jnp.float32)
    out3 = jax.block_until_ready(clip_loss(img3, txt3, temperature, block_rows=128))
    ref3 = _clip_loss_ref(img3, txt3, temperature)
    assert jnp.allclose(out3, ref3, rtol=1e-3, atol=1e-3), (out3, ref3)

    print("KERNEL_OK")
</pallas_src>

<mosaic_0001>
module attributes {stable_mosaic.version = 11 : i64} {
  func.func @_clip_loss_kernel(%arg0: i32, %arg1: memref<8x32xf32, #tpu.memory_space<vmem>>, %arg2: memref<8x32xf32, #tpu.memory_space<vmem>>, %arg3: memref<1x1xf32, #tpu.memory_space<vmem>>, %arg4: memref<1x8xf32, #tpu.memory_space<vmem>>, %arg5: memref<1x8xf32, #tpu.memory_space<vmem>>, %arg6: memref<1x1xf32, #tpu.memory_space<vmem>>) attributes {dimension_semantics = [#tpu.dimension_semantics<arbitrary>], iteration_bounds = array<i64: 1>, scalar_prefetch = 0 : i64, scratch_operands = 3 : i64, tpu.core_type = #tpu.core_type<tc>, window_params = [{transform_indices = @transform_0, window_bounds = array<i64: 8, 32>}, {pipeline_mode = #tpu.pipeline_mode<synchronous>, transform_indices = @transform_1, window_bounds = array<i64: 8, 32>}, {pipeline_mode = #tpu.pipeline_mode<synchronous>, transform_indices = @transform_2, window_bounds = array<i64: 1, 1>}]} {
    %c0_i32 = arith.constant 0 : i32
    %0 = arith.cmpi eq, %arg0, %c0_i32 : i32
    %1 = arith.extui %0 : i1 to i32
    %c0_i32_0 = arith.constant 0 : i32
    %2 = arith.cmpi ne, %1, %c0_i32_0 : i32
    scf.if %2 {
      %cst_30 = arith.constant 0xFF800000 : f32
      %57 = vector.broadcast %cst_30 : f32 to vector<1x8xf32>
      %c0_31 = arith.constant 0 : index
      %c0_32 = arith.constant 0 : index
      %58 = vector.load %arg4[%c0_31, %c0_32] : memref<1x8xf32, #tpu.memory_space<vmem>>, vector<1x8xf32>
      tpu.vector_store %arg4[%c0_31, %c0_32], %57 {strides = array<i32>} : memref<1x8xf32, #tpu.memory_space<vmem>>, vector<1x8xf32>,
      %cst_33 = arith.constant 0.000000e+00 : f32
      %59 = vector.broadcast %cst_33 : f32 to vector<1x8xf32>
      %c0_34 = arith.constant 0 : index
      %c0_35 = arith.constant 0 : index
      %60 = vector.load %arg5[%c0_34, %c0_35] : memref<1x8xf32, #tpu.memory_space<vmem>>, vector<1x8xf32>
      tpu.vector_store %arg5[%c0_34, %c0_35], %59 {strides = array<i32>} : memref<1x8xf32, #tpu.memory_space<vmem>>, vector<1x8xf32>,
      %cst_36 = arith.constant 0.000000e+00 : f32
      %61 = vector.broadcast %cst_36 : f32 to vector<1x1xf32>
      %c0_37 = arith.constant 0 : index
      %c0_38 = arith.constant 0 : index
      %62 = vector.load %arg6[%c0_37, %c0_38] : memref<1x1xf32, #tpu.memory_space<vmem>>, vector<1x1xf32>
      tpu.vector_store %arg6[%c0_37, %c0_38], %61 {strides = array<i32>} : memref<1x1xf32, #tpu.memory_space<vmem>>, vector<1x1xf32>,
    } else {
    }
    %c0 = arith.constant 0 : index
    %c0_1 = arith.constant 0 : index
    %3 = vector.load %arg1[%c0, %c0_1] : memref<8x32xf32, #tpu.memory_space<vmem>>, vector<8x32xf32>
    %c0_2 = arith.constant 0 : index
    %c0_3 = arith.constant 0 : index
    %4 = vector.load %arg2[%c0_2, %c0_3] : memref<8x32xf32, #tpu.memory_space<vmem>>, vector<8x32xf32>
    %cst = arith.constant dense<0.000000e+00> : vector<8x8xf32>
    %5 = tpu.matmul %3, %4, %cst {dimension_numbers = #tpu.dot_dimension_numbers<[1], [1], [0], [0], [0, 0, 1, 0], [], []>} : vector<8x32xf32>, vector<8x32xf32>, vector<8x8xf32> -> vector<8x8xf32>
    %cst_4 = arith.constant 14.2857141 : f32
    %6 = vector.broadcast %cst_4 : f32 to vector<8x8xf32>
    %7 = arith.mulf %5, %6 : vector<8x8xf32>
    %c8_i32 = arith.constant 8 : i32
    %8 = arith.muli %arg0, %c8_i32 : i32
    %9 = tpu.assume_multiple %8, 8 : i32
    %10 = arith.index_cast %9 : i32 to index
    %c0_5 = arith.constant 0 : index
    %11 = vector.load %arg2[%10, %c0_5] : memref<8x32xf32, #tpu.memory_space<vmem>>, vector<8x32xf32>
    %12 = arith.mulf %3, %11 : vector<8x32xf32>
    %cst_6 = arith.constant dense<0.000000e+00> : vector<8xf32>
    %13 = vector.multi_reduction <add>, %12, %cst_6 [1] : vector<8x32xf32> to vector<8xf32>
    %14 = vector.shape_cast %13 : vector<8xf32> to vector<8x1xf32>
    %cst_7 = arith.constant 14.2857141 : f32
    %15 = vector.broadcast %cst_7 : f32 to vector<8x1xf32>
    %16 = arith.mulf %15, %14 : vector<8x1xf32>
    %cst_8 = arith.constant dense<0xFF800000> : vector<8xf32>
    %17 = vector.multi_reduction <maximumf>, %7, %cst_8 [1] : vector<8x8xf32> to vector<8xf32>
    %18 = vector.shape_cast %17 : vector<8xf32> to vector<8x1xf32>
    %19 = vector.broadcast %18 : vector<8x1xf32> to vector<8x8xf32>
    %20 = arith.subf %7, %19 : vector<8x8xf32>
    %21 = math.exp %20 : vector<8x8xf32>
    %cst_9 = arith.constant dense<0.000000e+00> : vector<8xf32>
    %22 = vector.multi_reduction <add>, %21, %cst_9 [1] : vector<8x8xf32> to vector<8xf32>
    %23 = vector.shape_cast %22 : vector<8xf32> to vector<8x1xf32>
    %c0_10 = arith.constant 0 : index
    %c0_11 = arith.constant 0 : index
    %24 = vector.load %arg6[%c0_10, %c0_11] : memref<1x1xf32, #tpu.memory_space<vmem>>, vector<1x1xf32>
    %25 = math.log %23 : vector<8x1xf32>
    %26 = arith.addf %18, %25 : vector<8x1xf32>
    %cst_12 = arith.constant 2.000000e+00 : f32
    %27 = vector.broadcast %cst_12 : f32 to vector<8x1xf32>
    %28 = arith.mulf %27, %16 : vector<8x1xf32>
    %29 = arith.subf %26, %28 : vector<8x1xf32>
    %30 = vector.shape_cast %29 : vector<8x1xf32> to vector<1x8x1xf32>
    %cst_13 = arith.constant dense<0.000000e+00> : vector<1xf32>
    %31 = vector.multi_reduction <add>, %30, %cst_13 [1, 2] : vector<1x8x1xf32> to vector<1xf32>
    %32 = vector.shape_cast %31 : vector<1xf32> to vector<1x1x1xf32>
    %33 = vector.extract %32[0, 0, 0] : f32 from vector<1x1x1xf32>
    %34 = vector.broadcast %33 : f32 to vector<1x1xf32>
    %35 = arith.addf %24, %34 : vector<1x1xf32>
    %c0_14 = arith.constant 0 : index
    %c0_15 = arith.constant 0 : index
    %36 = vector.load %arg6[%c0_14, %c0_15] : memref<1x1xf32, #tpu.memory_space<vmem>>, vector<1x1xf32>
    tpu.vector_store %arg6[%c0_14, %c0_15], %35 {strides = array<i32>} : memref<1x1xf32, #tpu.memory_space<vmem>>, vector<1x1xf32>,
    %cst_16 = arith.constant dense<0xFF800000> : vector<8xf32>
    %37 = vector.multi_reduction <maximumf>, %7, %cst_16 [0] : vector<8x8xf32> to vector<8xf32>
    %38 = vector.shape_cast %37 : vector<8xf32> to vector<1x8xf32>
    %c0_17 = arith.constant 0 : index
    %c0_18 = arith.constant 0 : index
    %39 = vector.load %arg4[%c0_17, %c0_18] : memref<1x8xf32, #tpu.memory_space<vmem>>, vector<1x8xf32>
    %40 = arith.maximumf %39, %38 : vector<1x8xf32>
    %c0_19 = arith.constant 0 : index
    %c0_20 = arith.constant 0 : index
    %41 = vector.load %arg5[%c0_19, %c0_20] : memref<1x8xf32, #tpu.memory_space<vmem>>, vector<1x8xf32>
    %c0_21 = arith.constant 0 : index
    %c0_22 = arith.constant 0 : index
    %42 = vector.load %arg4[%c0_21, %c0_22] : memref<1x8xf32, #tpu.memory_space<vmem>>, vector<1x8xf32>
    %43 = arith.subf %42, %40 : vector<1x8xf32>
    %44 = math.exp %43 : vector<1x8xf32>
    %45 = arith.mulf %41, %44 : vector<1x8xf32>
    %46 = vector.broadcast %40 : vector<1x8xf32> to vector<8x8xf32>
    %47 = arith.subf %7, %46 : vector<8x8xf32>
    %48 = math.exp %47 : vector<8x8xf32>
    %cst_23 = arith.constant dense<0.000000e+00> : vector<8xf32>
    %49 = vector.multi_reduction <add>, %48, %cst_23 [0] : vector<8x8xf32> to vector<8xf32>
    %50 = vector.shape_cast %49 : vector<8xf32> to vector<1x8xf32>
    %51 = arith.addf %45, %50 : vector<1x8xf32>
    %c0_24 = arith.constant 0 : index
    %c0_25 = arith.constant 0 : index
    %52 = vector.load %arg5[%c0_24, %c0_25] : memref<1x8xf32, #tpu.memory_space<vmem>>, vector<1x8xf32>
    tpu.vector_store %arg5[%c0_24, %c0_25], %51 {strides = array<i32>} : memref<1x8xf32, #tpu.memory_space<vmem>>, vector<1x8xf32>,
    %c0_26 = arith.constant 0 : index
    %c0_27 = arith.constant 0 : index
    %53 = vector.load %arg4[%c0_26, %c0_27] : memref<1x8xf32, #tpu.memory_space<vmem>>, vector<1x8xf32>
    tpu.vector_store %arg4[%c0_26, %c0_27], %40 {strides = array<i32>} : memref<1x8xf32, #tpu.memory_space<vmem>>, vector<1x8xf32>,
    %c0_i32_28 = arith.constant 0 : i32
    %54 = arith.cmpi eq, %arg0, %c0_i32_28 : i32
    %55 = arith.extui %54 : i1 to i32
    %c0_i32_29 = arith.constant 0 : i32
    %56 = arith.cmpi ne, %55, %c0_i32_29 : i32
    scf.if %56 {
      %c0_30 = arith.constant 0 : index
      %c0_31 = arith.constant 0 : index
      %57 = vector.load %arg4[%c0_30, %c0_31] : memref<1x8xf32, #tpu.memory_space<vmem>>, vector<1x8xf32>
      %c0_32 = arith.constant 0 : index
      %c0_33 = arith.constant 0 : index
      %58 = vector.load %arg5[%c0_32, %c0_33] : memref<1x8xf32, #tpu.memory_space<vmem>>, vector<1x8xf32>
      %59 = math.log %58 : vector<1x8xf32>
      %60 = arith.addf %57, %59 : vector<1x8xf32>
      %c0_34 = arith.constant 0 : index
      %c0_35 = arith.constant 0 : index
      %61 = vector.load %arg6[%c0_34, %c0_35] : memref<1x1xf32, #tpu.memory_space<vmem>>, vector<1x1xf32>
      %62 = vector.shape_cast %60 : vector<1x8xf32> to vector<1x1x8xf32>
      %cst_36 = arith.constant dense<0.000000e+00> : vector<1xf32>
      %63 = vector.multi_reduction <add>, %62, %cst_36 [1, 2] : vector<1x1x8xf32> to vector<1xf32>
      %64 = vector.shape_cast %63 : vector<1xf32> to vector<1x1x1xf32>
      %65 = vector.extract %64[0, 0, 0] : f32 from vector<1x1x1xf32>
      %66 = vector.broadcast %65 : f32 to vector<1x1xf32>
      %67 = arith.addf %61, %66 : vector<1x1xf32>
      %cst_37 = arith.constant 1.600000e+01 : f32
      %68 = vector.broadcast %cst_37 : f32 to vector<1x1xf32>
      %69 = arith.divf %67, %68 : vector<1x1xf32>
      %c0_38 = arith.constant 0 : index
      %c0_39 = arith.constant 0 : index
      %70 = vector.load %arg3[%c0_38, %c0_39] : memref<1x1xf32, #tpu.memory_space<vmem>>, vector<1x1xf32>
      tpu.vector_store %arg3[%c0_38, %c0_39], %69 {strides = array<i32>} : memref<1x1xf32, #tpu.memory_space<vmem>>, vector<1x1xf32>,
    } else {
    }
    return
  }
  func.func @transform_0(%arg0: i32) -> (i32, i32) {
    %c0_i32 = arith.constant 0 : i32
    %c0_i32_0 = arith.constant 0 : i32
    return %arg0, %c0_i32 : i32, i32
  }
  func.func @transform_1(%arg0: i32) -> (i32, i32) {
    %c0_i32 = arith.constant 0 : i32
    %c0_i32_0 = arith.constant 0 : i32
    %c0_i32_1 = arith.constant 0 : i32
    return %c0_i32, %c0_i32_0 : i32, i32
  }
  func.func @transform_2(%arg0: i32) -> (i32, i32) {
    %c0_i32 = arith.constant 0 : i32
    %c0_i32_0 = arith.constant 0 : i32
    %c0_i32_1 = arith.constant 0 : i32
    return %c0_i32, %c0_i32_0 : i32, i32
  }
}

module attributes {stable_mosaic.version = 11 : i64} {
  func.func @_clip_loss_kernel(%arg0: i32, %arg1: memref<8x32xf32, #tpu.memory_space<vmem>>, %arg2: memref<8x32xf32, #tpu.memory_space<vmem>>, %arg3: memref<1x1xf32, #tpu.memory_space<vmem>>, %arg4: memref<1x8xf32, #tpu.memory_space<vmem>>, %arg5: memref<1x8xf32, #tpu.memory_space<vmem>>, %arg6: memref<1x1xf32, #tpu.memory_space<vmem>>) attributes {dimension_semantics = [#tpu.dimension_semantics<arbitrary>], iteration_bounds = array<i64: 1>, scalar_prefetch = 0 : i64, scratch_operands = 3 : i64, tpu.core_type = #tpu.core_type<tc>, window_params = [{transform_indices = @transform_0, window_bounds = array<i64: 8, 32>}, {pipeline_mode = #tpu.pipeline_mode<synchronous>, transform_indices = @transform_1, window_bounds = array<i64: 8, 32>}, {pipeline_mode = #tpu.pipeline_mode<synchronous>, transform_indices = @transform_2, window_bounds = array<i64: 1, 1>}]} {
    %c0_i32 = arith.constant 0 : i32
    %0 = arith.cmpi eq, %arg0, %c0_i32 : i32
    %1 = arith.extui %0 : i1 to i32
    %c0_i32_0 = arith.constant 0 : i32
    %2 = arith.cmpi ne, %1, %c0_i32_0 : i32
    scf.if %2 {
      %cst_30 = arith.constant 0xFF800000 : f32
      %57 = vector.broadcast %cst_30 : f32 to vector<1x8xf32>
      %c0_31 = arith.constant 0 : index
      %c0_32 = arith.constant 0 : index
      %58 = vector.load %arg4[%c0_31, %c0_32] : memref<1x8xf32, #tpu.memory_space<vmem>>, vector<1x8xf32>
      tpu.vector_store %arg4[%c0_31, %c0_32], %57 {strides = array<i32>} : memref<1x8xf32, #tpu.memory_space<vmem>>, vector<1x8xf32>,
      %cst_33 = arith.constant 0.000000e+00 : f32
      %59 = vector.broadcast %cst_33 : f32 to vector<1x8xf32>
      %c0_34 = arith.constant 0 : index
      %c0_35 = arith.constant 0 : index
      %60 = vector.load %arg5[%c0_34, %c0_35] : memref<1x8xf32, #tpu.memory_space<vmem>>, vector<1x8xf32>
      tpu.vector_store %arg5[%c0_34, %c0_35], %59 {strides = array<i32>} : memref<1x8xf32, #tpu.memory_space<vmem>>, vector<1x8xf32>,
      %cst_36 = arith.constant 0.000000e+00 : f32
      %61 = vector.broadcast %cst_36 : f32 to vector<1x1xf32>
      %c0_37 = arith.constant 0 : index
      %c0_38 = arith.constant 0 : index
      %62 = vector.load %arg6[%c0_37, %c0_38] : memref<1x1xf32, #tpu.memory_space<vmem>>, vector<1x1xf32>
      tpu.vector_store %arg6[%c0_37, %c0_38], %61 {strides = array<i32>} : memref<1x1xf32, #tpu.memory_space<vmem>>, vector<1x1xf32>,
    } else {
    }
    %c0 = arith.constant 0 : index
    %c0_1 = arith.constant 0 : index
    %3 = vector.load %arg1[%c0, %c0_1] : memref<8x32xf32, #tpu.memory_space<vmem>>, vector<8x32xf32>
    %c0_2 = arith.constant 0 : index
    %c0_3 = arith.constant 0 : index
    %4 = vector.load %arg2[%c0_2, %c0_3] : memref<8x32xf32, #tpu.memory_space<vmem>>, vector<8x32xf32>
    %cst = arith.constant dense<0.000000e+00> : vector<8x8xf32>
    %5 = tpu.matmul %3, %4, %cst {dimension_numbers = #tpu.dot_dimension_numbers<[1], [1], [0], [0], [0, 0, 1, 0], [], []>} : vector<8x32xf32>, vector<8x32xf32>, vector<8x8xf32> -> vector<8x8xf32>
    %cst_4 = arith.constant 14.2857141 : f32
    %6 = vector.broadcast %cst_4 : f32 to vector<8x8xf32>
    %7 = arith.mulf %5, %6 : vector<8x8xf32>
    %c8_i32 = arith.constant 8 : i32
    %8 = arith.muli %arg0, %c8_i32 : i32
    %9 = tpu.assume_multiple %8, 8 : i32
    %10 = arith.index_cast %9 : i32 to index
    %c0_5 = arith.constant 0 : index
    %11 = vector.load %arg2[%10, %c0_5] : memref<8x32xf32, #tpu.memory_space<vmem>>, vector<8x32xf32>
    %12 = arith.mulf %3, %11 : vector<8x32xf32>
    %cst_6 = arith.constant dense<0.000000e+00> : vector<8xf32>
    %13 = vector.multi_reduction <add>, %12, %cst_6 [1] : vector<8x32xf32> to vector<8xf32>
    %14 = vector.shape_cast %13 : vector<8xf32> to vector<8x1xf32>
    %cst_7 = arith.constant 14.2857141 : f32
    %15 = vector.broadcast %cst_7 : f32 to vector<8x1xf32>
    %16 = arith.mulf %15, %14 : vector<8x1xf32>
    %cst_8 = arith.constant dense<0xFF800000> : vector<8xf32>
    %17 = vector.multi_reduction <maximumf>, %7, %cst_8 [1] : vector<8x8xf32> to vector<8xf32>
    %18 = vector.shape_cast %17 : vector<8xf32> to vector<8x1xf32>
    %19 = vector.broadcast %18 : vector<8x1xf32> to vector<8x8xf32>
    %20 = arith.subf %7, %19 : vector<8x8xf32>
    %21 = math.exp %20 : vector<8x8xf32>
    %cst_9 = arith.constant dense<0.000000e+00> : vector<8xf32>
    %22 = vector.multi_reduction <add>, %21, %cst_9 [1] : vector<8x8xf32> to vector<8xf32>
    %23 = vector.shape_cast %22 : vector<8xf32> to vector<8x1xf32>
    %c0_10 = arith.constant 0 : index
    %c0_11 = arith.constant 0 : index
    %24 = vector.load %arg6[%c0_10, %c0_11] : memref<1x1xf32, #tpu.memory_space<vmem>>, vector<1x1xf32>
    %25 = math.log %23 : vector<8x1xf32>
    %26 = arith.addf %18, %25 : vector<8x1xf32>
    %cst_12 = arith.constant 2.000000e+00 : f32
    %27 = vector.broadcast %cst_12 : f32 to vector<8x1xf32>
    %28 = arith.mulf %27, %16 : vector<8x1xf32>
    %29 = arith.subf %26, %28 : vector<8x1xf32>
    %30 = vector.shape_cast %29 : vector<8x1xf32> to vector<1x8x1xf32>
    %cst_13 = arith.constant dense<0.000000e+00> : vector<1xf32>
    %31 = vector.multi_reduction <add>, %30, %cst_13 [1, 2] : vector<1x8x1xf32> to vector<1xf32>
    %32 = vector.shape_cast %31 : vector<1xf32> to vector<1x1x1xf32>
    %33 = vector.extract %32[0, 0, 0] : f32 from vector<1x1x1xf32>
    %34 = vector.broadcast %33 : f32 to vector<1x1xf32>
    %35 = arith.addf %24, %34 : vector<1x1xf32>
    %c0_14 = arith.constant 0 : index
    %c0_15 = arith.constant 0 : index
    %36 = vector.load %arg6[%c0_14, %c0_15] : memref<1x1xf32, #tpu.memory_space<vmem>>, vector<1x1xf32>
    tpu.vector_store %arg6[%c0_14, %c0_15], %35 {strides = array<i32>} : memref<1x1xf32, #tpu.memory_space<vmem>>, vector<1x1xf32>,
    %cst_16 = arith.constant dense<0xFF800000> : vector<8xf32>
    %37 = vector.multi_reduction <maximumf>, %7, %cst_16 [0] : vector<8x8xf32> to vector<8xf32>
    %38 = vector.shape_cast %37 : vector<8xf32> to vector<1x8xf32>
    %c0_17 = arith.constant 0 : index
    %c0_18 = arith.constant 0 : index
    %39 = vector.load %arg4[%c0_17, %c0_18] : memref<1x8xf32, #tpu.memory_space<vmem>>, vector<1x8xf32>
    %40 = arith.maximumf %39, %38 : vector<1x8xf32>
    %c0_19 = arith.constant 0 : index
    %c0_20 = arith.constant 0 : index
    %41 = vector.load %arg5[%c0_19, %c0_20] : memref<1x8xf32, #tpu.memory_space<vmem>>, vector<1x8xf32>
    %c0_21 = arith.constant 0 : index
    %c0_22 = arith.constant 0 : index
    %42 = vector.load %arg4[%c0_21, %c0_22] : memref<1x8xf32, #tpu.memory_space<vmem>>, vector<1x8xf32>
    %43 = arith.subf %42, %40 : vector<1x8xf32>
    %44 = math.exp %43 : vector<1x8xf32>
    %45 = arith.mulf %41, %44 : vector<1x8xf32>
    %46 = vector.broadcast %40 : vector<1x8xf32> to vector<8x8xf32>
    %47 = arith.subf %7, %46 : vector<8x8xf32>
    %48 = math.exp %47 : vector<8x8xf32>
    %cst_23 = arith.constant dense<0.000000e+00> : vector<8xf32>
    %49 = vector.multi_reduction <add>, %48, %cst_23 [0] : vector<8x8xf32> to vector<8xf32>
    %50 = vector.shape_cast %49 : vector<8xf32> to vector<1x8xf32>
    %51 = arith.addf %45, %50 : vector<1x8xf32>
    %c0_24 = arith.constant 0 : index
    %c0_25 = arith.constant 0 : index
    %52 = vector.load %arg5[%c0_24, %c0_25] : memref<1x8xf32, #tpu.memory_space<vmem>>, vector<1x8xf32>
    tpu.vector_store %arg5[%c0_24, %c0_25], %51 {strides = array<i32>} : memref<1x8xf32, #tpu.memory_space<vmem>>, vector<1x8xf32>,
    %c0_26 = arith.constant 0 : index
    %c0_27 = arith.constant 0 : index
    %53 = vector.load %arg4[%c0_26, %c0_27] : memref<1x8xf32, #tpu.memory_space<vmem>>, vector<1x8xf32>
    tpu.vector_store %arg4[%c0_26, %c0_27], %40 {strides = array<i32>} : memref<1x8xf32, #tpu.memory_space<vmem>>, vector<1x8xf32>,
    %c0_i32_28 = arith.constant 0 : i32
    %54 = arith.cmpi eq, %arg0, %c0_i32_28 : i32
    %55 = arith.extui %54 : i1 to i32
    %c0_i32_29 = arith.constant 0 : i32
    %56 = arith.cmpi ne, %55, %c0_i32_29 : i32
    scf.if %56 {
      %c0_30 = arith.constant 0 : index
      %c0_31 = arith.constant 0 : index
      %57 = vector.load %arg4[%c0_30, %c0_31] : memref<1x8xf32, #tpu.memory_space<vmem>>, vector<1x8xf32>
      %c0_32 = arith.constant 0 : index
      %c0_33 = arith.constant 0 : index
      %58 = vector.load %arg5[%c0_32, %c0_33] : memref<1x8xf32, #tpu.memory_space<vmem>>, vector<1x8xf32>
      %59 = math.log %58 : vector<1x8xf32>
      %60 = arith.addf %57, %59 : vector<1x8xf32>
      %c0_34 = arith.constant 0 : index
      %c0_35 = arith.constant 0 : index
      %61 = vector.load %arg6[%c0_34, %c0_35] : memref<1x1xf32, #tpu.memory_space<vmem>>, vector<1x1xf32>
      %62 = vector.shape_cast %60 : vector<1x8xf32> to vector<1x1x8xf32>
      %cst_36 = arith.constant dense<0.000000e+00> : vector<1xf32>
      %63 = vector.multi_reduction <add>, %62, %cst_36 [1, 2] : vector<1x1x8xf32> to vector<1xf32>
      %64 = vector.shape_cast %63 : vector<1xf32> to vector<1x1x1xf32>
      %65 = vector.extract %64[0, 0, 0] : f32 from vector<1x1x1xf32>
      %66 = vector.broadcast %65 : f32 to vector<1x1xf32>
      %67 = arith.addf %61, %66 : vector<1x1xf32>
      %cst_37 = arith.constant 1.600000e+01 : f32
      %68 = vector.broadcast %cst_37 : f32 to vector<1x1xf32>
      %69 = arith.divf %67, %68 : vector<1x1xf32>
      %c0_38 = arith.constant 0 : index
      %c0_39 = arith.constant 0 : index
      %70 = vector.load %arg3[%c0_38, %c0_39] : memref<1x1xf32, #tpu.memory_space<vmem>>, vector<1x1xf32>
      tpu.vector_store %arg3[%c0_38, %c0_39], %69 {strides = array<i32>} : memref<1x1xf32, #tpu.memory_space<vmem>>, vector<1x1xf32>,
    } else {
    }
    return
  }
  func.func @transform_0(%arg0: i32) -> (i32, i32) {
    %c0_i32 = arith.constant 0 : i32
    %c0_i32_0 = arith.constant 0 : i32
    return %arg0, %c0_i32 : i32, i32
  }
  func.func @transform_1(%arg0: i32) -> (i32, i32) {
    %c0_i32 = arith.constant 0 : i32
    %c0_i32_0 = arith.constant 0 : i32
    %c0_i32_1 = arith.constant 0 : i32
    return %c0_i32, %c0_i32_0 : i32, i32
  }
  func.func @transform_2(%arg0: i32) -> (i32, i32) {
    %c0_i32 = arith.constant 0 : i32
    %c0_i32_0 = arith.constant 0 : i32
    %c0_i32_1 = arith.constant 0 : i32
    return %c0_i32, %c0_i32_0 : i32, i32
  }
}

</mosaic_0001>

<llo_original>
// kernel: tpu_custom_call.1
$region0: #{tpu_custom_call.1}
  #allocation0 [shape = 'u32[]', space=smem, size = 0x4, offset = 0x4, fixed_abs, tag = 'smem constant byte address 0x4 - core index']
  #allocation1 [shape = 'u32[144,128]{1,0:T(1,128)}', space=vmem, size = 0x12000, scoped, tag = 'internal scratch']
  #allocation2 [shape = 'f32[1,8]{1,0:T(1,128)}', space=vmem, size = 0x200, scoped, tag = 'scratch operand']
  #allocation3 [shape = 'f32[1,8]{1,0:T(1,128)}', space=vmem, size = 0x200, scoped, tag = 'scratch operand']
  #allocation4 [shape = 'f32[1,1]{1,0:T(1,128)}', space=vmem, size = 0x200, scoped, tag = 'scratch operand']
  %s0 = inlined_call_operand.hbm [shape: f32[8,32], index: 0, kind: input, shape index: {}]
  %s1 = inlined_call_operand.hbm [shape: f32[8,32], index: 1, kind: input, shape index: {}]
  %s2 = inlined_call_operand.hbm [shape: f32[1,1], index: 2, kind: output, shape index: {}]
  %s3 = sld [smem:[#allocation0]]
  $region34: #{tpu_custom_call.1} parent=0
    _
  %s5 = ssub.s32 1, %s3
  %s6 = scalar_select 0, %s5, %s3
  $region1: #{tpu_custom_call.1} parent=0
    #allocation5 [shape = 'u8[4096]{0}', space=vmem, size = 0x1000, scoped, tag = 'input window, operand 0, single buffered']
    #allocation6 [shape = 's32[1]{0}', space=sflag, size = 0x4, scoped, tag = 'scoped memory for tpu_custom_call.1']
    #allocation7 [shape = 's32[1]{0}', space=sflag, size = 0x4, scoped, tag = 'scoped memory for tpu_custom_call.1']
    #allocation8 [shape = 'u8[4096]{0}', space=vmem, size = 0x1000, scoped, tag = 'input window, operand 1, single buffered']
    #allocation9 [shape = 's32[1]{0}', space=sflag, size = 0x4, scoped, tag = 'scoped memory for tpu_custom_call.1']
    #allocation10 [shape = 'u8[512]{0}', space=vmem, size = 0x400, scoped, tag = 'output window, operand 0, single buffered']
    %7 = vsyncpa [#allocation6], 0
    %8 = vsyncpa [#allocation9], 0
    %9 = vsyncpa [#allocation7], 0
    // Predicated region
    $region2: #{tpu_custom_call.1} parent=1 // pred_check
      _
    $region3: #{tpu_custom_call.1} parent=1 // pred_check_branch
      %11 = sbr.rel (0) target = $region5
    $region4: #{tpu_custom_call.1} parent=1 // pred_region
      %s13 = ssub.s32 128, 128
      %14 = vsyncadd [#allocation6], %s13
      %s16 = sshll.u32 [#allocation5], 4
      %s17 = int_to_ptr.vmem [resolvable:$true] %s16
      %19 = dma.hbm_to_vmem [thread:$0]  %s0, 128, %s17, [#allocation6]
    $region5: #{tpu_custom_call.1} parent=1 // pred_fallthru
      _
    // Predicated region
    $region6: #{tpu_custom_call.1} parent=1 // pred_check
      _
    $region7: #{tpu_custom_call.1} parent=1 // pred_check_branch
      %21 = sbr.rel (0) target = $region9
    $region8: #{tpu_custom_call.1} parent=1 // pred_region
      %s23 = ssub.s32 128, 128
      %24 = vsyncadd [#allocation9], %s23
      %s26 = sshll.u32 [#allocation8], 4
      %s27 = int_to_ptr.vmem [resolvable:$true] %s26
      %29 = dma.hbm_to_vmem [thread:$0]  %s1, 128, %s27, [#allocation9]
    $region9: #{tpu_custom_call.1} parent=1 // pred_fallthru
      _
    // Predicated region
    $region10: #{tpu_custom_call.1} parent=1 // pred_check
      _
    $region11: #{tpu_custom_call.1} parent=1 // pred_check_branch
      %31 = sbr.rel (0) target = $region13
    $region12: #{tpu_custom_call.1} parent=1 // pred_region
      %32 = dma.done [#allocation6], 128
    $region13: #{tpu_custom_call.1} parent=1 // pred_fallthru
      _
    // Predicated region
    $region14: #{tpu_custom_call.1} parent=1 // pred_check
      _
    $region15: #{tpu_custom_call.1} parent=1 // pred_check_branch
      %34 = sbr.rel (0) target = $region17
    $region16: #{tpu_custom_call.1} parent=1 // pred_region
      %35 = dma.done [#allocation9], 128
    $region17: #{tpu_custom_call.1} parent=1 // pred_fallthru
      _
    %p36 = scmp.eq.s32.totalorder 0, 0
    // Predicated region
    $region18: #{tpu_custom_call.1} parent=1 // pred_check
      %p37 = pneg %p36
    $region19: #{tpu_custom_call.1} parent=1 // pred_check_branch
      %39 = sbr.rel (%p37) target = $region21
    $region20: #{tpu_custom_call.1} parent=1 // pred_region
      %vm40 = vcmask 57344
      %41 = vst.msk [vmem:[#allocation2] sm:$0x1] %vm40, -inf
      %42 = vst.msk [vmem:[#allocation3] sm:$0x1] %vm40, 0.0
      %vm43 = vcmask 0
      %44 = vst.msk [vmem:[#allocation4] sm:$0x1] %vm43, 0.0
    $region21: #{tpu_custom_call.1} parent=1 // pred_fallthru
      _
    %v45 = vld [vmem:[#allocation5] sm:$0xff]
    %v46 = vld [vmem:[#allocation8] sm:$0xff]
    %vm47 = vcmask 261120
    %v49 = vsel %vm47, %v45, 0
    %v52 = vsel %vm47, %v46, 0
    %54 = vmatprep.subr.mxu0 0.0
    %55 = vmatpush1.xpose.msra.mxu0 %v52
    %56 = vmatprep.subr.mxu0 0.0
    %57 = vmatpush1.xpose.msra.mxu0 0.0
    %58 = vmatprep.subr.mxu0 0.0
    %59 = vmatpush1.xpose.msra.mxu0 0.0
    %60 = vmatprep.subr.mxu0 0.0
    %61 = vmatpush1.xpose.msra.mxu0 0.0
    %62 = vmatprep.subr.mxu0 0.0
    %63 = vmatpush1.xpose.msra.mxu0 0.0
    %64 = vmatprep.subr.mxu0 0.0
    %65 = vmatpush1.xpose.msra.mxu0 0.0
    %66 = vmatprep.subr.mxu0 0.0
    %67 = vmatpush1.xpose.msra.mxu0 0.0
    %68 = vmatprep.subr.mxu0 0.0
    %69 = vmatpush1.xpose.msra.mxu0 0.0
    %70 = vmatprep.subr.mxu0 0.0
    %71 = vmatpush1.xpose.msra.mxu0 0.0
    %72 = vmatprep.subr.mxu0 0.0
    %73 = vmatpush1.xpose.msra.mxu0 0.0
    %74 = vmatprep.subr.mxu0 0.0
    %75 = vmatpush1.xpose.msra.mxu0 0.0
    %76 = vmatprep.subr.mxu0 0.0
    %77 = vmatpush1.xpose.msra.mxu0 0.0
    %78 = vmatprep.subr.mxu0 0.0
    %79 = vmatpush1.xpose.msra.mxu0 0.0
    %80 = vmatprep.subr.mxu0 0.0
    %81 = vmatpush1.xpose.msra.mxu0 0.0
    %82 = vmatprep.subr.mxu0 0.0
    %83 = vmatpush1.xpose.msra.mxu0 0.0
    %84 = vmatprep.subr.mxu0 0.0
    %85 = vmatpush1.xpose.msra.mxu0 0.0
    %86 = vmatprep.subr.mxu0 0.0
    %87 = vmatpush1.xpose.msra.mxu0 0.0
    %88 = vmatprep.subr.mxu0 0.0
    %89 = vmatpush1.xpose.msra.mxu0 0.0
    %90 = vmatprep.subr.mxu0 0.0
    %91 = vmatpush1.xpose.msra.mxu0 0.0
    %92 = vmatprep.subr.mxu0 0.0
    %93 = vmatpush1.xpose.msra.mxu0 0.0
    %94 = vmatprep.subr.mxu0 0.0
    %95 = vmatpush1.xpose.msra.mxu0 0.0
    %96 = vmatprep.subr.mxu0 0.0
    %97 = vmatpush1.xpose.msra.mxu0 0.0
    %98 = vmatprep.subr.mxu0 0.0
    %99 = vmatpush1.xpose.msra.mxu0 0.0
    %100 = vmatprep.subr.mxu0 0.0
    %101 = vmatpush1.xpose.msra.mxu0 0.0
    %102 = vmatprep.subr.mxu0 0.0
    %103 = vmatpush1.xpose.msra.mxu0 0.0
    %104 = vmatprep.subr.mxu0 0.0
    %105 = vmatpush1.xpose.msra.mxu0 0.0
    %106 = vmatprep.subr.mxu0 0.0
    %107 = vmatpush1.xpose.msra.mxu0 0.0
    %108 = vmatprep.subr.mxu0 0.0
    %109 = vmatpush1.xpose.msra.mxu0 0.0
    %110 = vmatprep.subr.mxu0 0.0
    %111 = vmatpush1.xpose.msra.mxu0 0.0
    %112 = vmatprep.subr.mxu0 0.0
    %113 = vmatpush1.xpose.msra.mxu0 0.0
    %114 = vmatprep.subr.mxu0 0.0
    %115 = vmatpush1.xpose.msra.mxu0 0.0
    %116 = vmatprep.subr.mxu0 0.0
    %117 = vmatpush1.xpose.msra.mxu0 0.0
    %118 = vmatprep.mubr.f32.mxu0 0.0
    %119 = vmatmul.mubr.f32.gmra.mrb[0].mxu0 %v49
    %v120 = vpop.f32.mrb[0].mxu0
    %v121 = vadd.f32 0.0, %v120
    %v122 = vpop.f32.mrb[0].mxu0
    %123 = vdwg.mxu0
    %v124 = vmul.f32 %v121, 14.285714
    %s125 = smul.u32 0, 8
    %s126 = scalar_lea.vmem [#allocation8], %s125
    %v127 = vld [vmem:[%s126] sm:$0xff]
    %v128 = vmul.f32 %v45, %v127
    %v129 = vsel %vm47, %v128, 0.0
    %130 = vadd.xlane.f32.xlu0 %v129
    %v131 = vpop.xlane.xlu0 %130
    %v132 = vmul.f32 %v131, 14.285714
    %vm133 = vcmask 64512
    %v134 = vsel %vm133, %v124, -inf
    %135 = vmax.xlane.f32.xlu0 %v134
    %v136 = vpop.xlane.xlu0 %135
    %v137 = vsub.f32 %v124, %v136
    %v138 = vmul.f32 %v137, 1.442695
    %v139 = vpow.pop %v138
    %v140 = vsel %vm133, %v139, 0.0
    %141 = vadd.xlane.f32.xlu0 %v140
    %v142 = vpop.xlane.xlu0 %141
    %v143 = vld [vmem:[#allocation4] sm:$0x1]
    %v144 = vlog2.pop %v142
    %v145 = vmul.f32 %v144, 0.6931472
    %v146 = vadd.f32 %v136, %v145
    %v147 = vmul.f32 %v132, 2.0
    %v148 = vsub.f32 %v146, %v147
    %vm149 = vcmask 7168
    %v150 = vsel %vm149, %v148, 0.0
    %151 = vadd.xlane.f32.xlu0 %v150
    %v152 = vpop.xlane.xlu0 %151
    %v153 = vrot.slane %v152, 4
    %v154 = vadd.f32 %v152, %v153
    %v155 = vrot.slane %v154, 2
    %v156 = vadd.f32 %v154, %v155
    %v157 = vrot.slane %v156, 1
    %v158 = vadd.f32 %v156, %v157
    %s159 = vtos %v158
    %v160 = vstv %s159
    %v161 = vadd.f32 %v143, %v160
    %vm162 = vcmask 0
    %163 = vst.msk [vmem:[#allocation4] sm:$0x1] %vm162, %v161
    %v164 = vrot.slane %v134, 4
    %v165 = vmax.f32 %v134, %v164
    %v166 = vrot.slane %v165, 2
    %v167 = vmax.f32 %v165, %v166
    %v168 = vrot.slane %v167, 1
    %v169 = vmax.f32 %v167, %v168
    %v170 = vld [vmem:[#allocation2] sm:$0x1]
    %v171 = vmax.f32 %v170, %v169
    %v172 = vld [vmem:[#allocation3] sm:$0x1]
    %v173 = vsub.f32 %v170, %v171
    %v174 = vmul.f32 %v173, 1.442695
    %v175 = vpow.pop %v174
    %v176 = vmul.f32 %v172, %v175
    %v178 = vlaneseq
    %v179 = vshrl.u32 %v178, 7
    %v180 = vsub.s32 0, %v179
    %v181 = vrot.slane %v171, %v180
    %v183 = vsub.f32 %v124, %v181
    %v184 = vmul.f32 %v183, 1.442695
    %v185 = vpow.pop %v184
    %v186 = vsel %vm133, %v185, 0.0
    %v187 = vrot.slane %v186, 4
    %v188 = vadd.f32 %v186, %v187
    %v189 = vrot.slane %v188, 2
    %v190 = vadd.f32 %v188, %v189
    %v191 = vrot.slane %v190, 1
    %v192 = vadd.f32 %v190, %v191
    %v193 = vadd.f32 %v176, %v192
    %vm194 = vcmask 57344
    %195 = vst.msk [vmem:[#allocation3] sm:$0x1] %vm194, %v193
    %196 = vst.msk [vmem:[#allocation2] sm:$0x1] %vm194, %v171
    // Predicated region
    $region22: #{tpu_custom_call.1} parent=1 // pred_check
      %p197 = pneg %p36
    $region23: #{tpu_custom_call.1} parent=1 // pred_check_branch
      %199 = sbr.rel (%p197) target = $region25
    $region24: #{tpu_custom_call.1} parent=1 // pred_region
      %v200 = vld [vmem:[#allocation2] sm:$0x1]
      %v201 = vld [vmem:[#allocation3] sm:$0x1]
      %v202 = vlog2.pop %v201
      %v203 = vmul.f32 %v202, 0.6931472
      %v204 = vadd.f32 %v200, %v203
      %v205 = vld [vmem:[#allocation4] sm:$0x1]
      %v206 = vsel %vm194, %v204, 0.0
      %207 = vadd.xlane.f32.xlu0 %v206
      %v208 = vpop.xlane.xlu0 %207
      %v209 = vrot.slane %v208, 4
      %v210 = vadd.f32 %v208, %v209
      %v211 = vrot.slane %v210, 2
      %v212 = vadd.f32 %v210, %v211
      %v213 = vrot.slane %v212, 1
      %v214 = vadd.f32 %v212, %v213
      %s215 = vtos %v214
      %v216 = vstv %s215
      %v217 = vadd.f32 %v205, %v216
      %v218 = vrcp.pop 16.0
      %v219 = vmul.f32 %v217, %v218
      %220 = vst.msk [vmem:[#allocation10] sm:$0x1] %vm162, %v219
    $region25: #{tpu_custom_call.1} parent=1 // pred_fallthru
      _
    // Predicated region
    $region26: #{tpu_custom_call.1} parent=1 // pred_check
      _
    $region27: #{tpu_custom_call.1} parent=1 // pred_check_branch
      %222 = sbr.rel (0) target = $region29
    $region28: #{tpu_custom_call.1} parent=1 // pred_region
      %s224 = ssub.s32 16, 16
      %225 = vsyncadd [#allocation7], %s224
      %s227 = sshll.u32 [#allocation10], 4
      %s228 = int_to_ptr.vmem [resolvable:$true] %s227
      %230 = dma.vmem_to_hbm [thread:$0]  %s228, 16, %s2, [#allocation7]
    $region29: #{tpu_custom_call.1} parent=1 // pred_fallthru
      _
    // Predicated region
    $region30: #{tpu_custom_call.1} parent=1 // pred_check
      _
    $region31: #{tpu_custom_call.1} parent=1 // pred_check_branch
      %232 = sbr.rel (0) target = $region33
    $region32: #{tpu_custom_call.1} parent=1 // pred_region
      %233 = dma.done [#allocation7], 16
    $region33: #{tpu_custom_call.1} parent=1 // pred_fallthru
      _
    %234 = vsyncpa [#allocation6], 1
    %235 = vsyncpa [#allocation9], 1
    %236 = vsyncpa [#allocation7], 1

// kernel: tpu_custom_call.1
$region0: #{tpu_custom_call.1}
  #allocation0 [shape = 'u32[]', space=smem, size = 0x4, offset = 0x4, fixed_abs, tag = 'smem constant byte address 0x4 - core index']
  #allocation1 [shape = 'u32[144,128]{1,0:T(1,128)}', space=vmem, size = 0x12000, scoped, tag = 'internal scratch']
  #allocation2 [shape = 'f32[1,8]{1,0:T(1,128)}', space=vmem, size = 0x200, scoped, tag = 'scratch operand']
  #allocation3 [shape = 'f32[1,8]{1,0:T(1,128)}', space=vmem, size = 0x200, scoped, tag = 'scratch operand']
  #allocation4 [shape = 'f32[1,1]{1,0:T(1,128)}', space=vmem, size = 0x200, scoped, tag = 'scratch operand']
  %s0 = inlined_call_operand.hbm [shape: f32[8,32], index: 0, kind: input, shape index: {}]
  %s1 = inlined_call_operand.hbm [shape: f32[8,32], index: 1, kind: input, shape index: {}]
  %s2 = inlined_call_operand.hbm [shape: f32[1,1], index: 2, kind: output, shape index: {}]
  %s3 = sld [smem:[#allocation0]]
  $region34: #{tpu_custom_call.1} parent=0
    _
  %s5 = ssub.s32 1, %s3
  %s6 = scalar_select 0, %s5, %s3
  $region1: #{tpu_custom_call.1} parent=0
    #allocation5 [shape = 'u8[4096]{0}', space=vmem, size = 0x1000, scoped, tag = 'input window, operand 0, single buffered']
    #allocation6 [shape = 's32[1]{0}', space=sflag, size = 0x4, scoped, tag = 'scoped memory for tpu_custom_call.1']
    #allocation7 [shape = 's32[1]{0}', space=sflag, size = 0x4, scoped, tag = 'scoped memory for tpu_custom_call.1']
    #allocation8 [shape = 'u8[4096]{0}', space=vmem, size = 0x1000, scoped, tag = 'input window, operand 1, single buffered']
    #allocation9 [shape = 's32[1]{0}', space=sflag, size = 0x4, scoped, tag = 'scoped memory for tpu_custom_call.1']
    #allocation10 [shape = 'u8[512]{0}', space=vmem, size = 0x400, scoped, tag = 'output window, operand 0, single buffered']
    %7 = vsyncpa [#allocation6], 0
    %8 = vsyncpa [#allocation9], 0
    %9 = vsyncpa [#allocation7], 0
    // Predicated region
    $region2: #{tpu_custom_call.1} parent=1 // pred_check
      _
    $region3: #{tpu_custom_call.1} parent=1 // pred_check_branch
      %11 = sbr.rel (0) target = $region5
    $region4: #{tpu_custom_call.1} parent=1 // pred_region
      %s13 = ssub.s32 128, 128
      %14 = vsyncadd [#allocation6], %s13
      %s16 = sshll.u32 [#allocation5], 4
      %s17 = int_to_ptr.vmem [resolvable:$true] %s16
      %19 = dma.hbm_to_vmem [thread:$0]  %s0, 128, %s17, [#allocation6]
    $region5: #{tpu_custom_call.1} parent=1 // pred_fallthru
      _
    // Predicated region
    $region6: #{tpu_custom_call.1} parent=1 // pred_check
      _
    $region7: #{tpu_custom_call.1} parent=1 // pred_check_branch
      %21 = sbr.rel (0) target = $region9
    $region8: #{tpu_custom_call.1} parent=1 // pred_region
      %s23 = ssub.s32 128, 128
      %24 = vsyncadd [#allocation9], %s23
      %s26 = sshll.u32 [#allocation8], 4
      %s27 = int_to_ptr.vmem [resolvable:$true] %s26
      %29 = dma.hbm_to_vmem [thread:$0]  %s1, 128, %s27, [#allocation9]
    $region9: #{tpu_custom_call.1} parent=1 // pred_fallthru
      _
    // Predicated region
    $region10: #{tpu_custom_call.1} parent=1 // pred_check
      _
    $region11: #{tpu_custom_call.1} parent=1 // pred_check_branch
      %31 = sbr.rel (0) target = $region13
    $region12: #{tpu_custom_call.1} parent=1 // pred_region
      %32 = dma.done [#allocation6], 128
    $region13: #{tpu_custom_call.1} parent=1 // pred_fallthru
      _
    // Predicated region
    $region14: #{tpu_custom_call.1} parent=1 // pred_check
      _
    $region15: #{tpu_custom_call.1} parent=1 // pred_check_branch
      %34 = sbr.rel (0) target = $region17
    $region16: #{tpu_custom_call.1} parent=1 // pred_region
      %35 = dma.done [#allocation9], 128
    $region17: #{tpu_custom_call.1} parent=1 // pred_fallthru
      _
    %p36 = scmp.eq.s32.totalorder 0, 0
    // Predicated region
    $region18: #{tpu_custom_call.1} parent=1 // pred_check
      %p37 = pneg %p36
    $region19: #{tpu_custom_call.1} parent=1 // pred_check_branch
      %39 = sbr.rel (%p37) target = $region21
    $region20: #{tpu_custom_call.1} parent=1 // pred_region
      %vm40 = vcmask 57344
      %41 = vst.msk [vmem:[#allocation2] sm:$0x1] %vm40, -inf
      %42 = vst.msk [vmem:[#allocation3] sm:$0x1] %vm40, 0.0
      %vm43 = vcmask 0
      %44 = vst.msk [vmem:[#allocation4] sm:$0x1] %vm43, 0.0
    $region21: #{tpu_custom_call.1} parent=1 // pred_fallthru
      _
    %v45 = vld [vmem:[#allocation5] sm:$0xff]
    %v46 = vld [vmem:[#allocation8] sm:$0xff]
    %vm47 = vcmask 261120
    %v49 = vsel %vm47, %v45, 0
    %v52 = vsel %vm47, %v46, 0
    %54 = vmatprep.subr.mxu0 0.0
    %55 = vmatpush1.xpose.msra.mxu0 %v52
    %56 = vmatprep.subr.mxu0 0.0
    %57 = vmatpush1.xpose.msra.mxu0 0.0
    %58 = vmatprep.subr.mxu0 0.0
    %59 = vmatpush1.xpose.msra.mxu0 0.0
    %60 = vmatprep.subr.mxu0 0.0
    %61 = vmatpush1.xpose.msra.mxu0 0.0
    %62 = vmatprep.subr.mxu0 0.0
    %63 = vmatpush1.xpose.msra.mxu0 0.0
    %64 = vmatprep.subr.mxu0 0.0
    %65 = vmatpush1.xpose.msra.mxu0 0.0
    %66 = vmatprep.subr.mxu0 0.0
    %67 = vmatpush1.xpose.msra.mxu0 0.0
    %68 = vmatprep.subr.mxu0 0.0
    %69 = vmatpush1.xpose.msra.mxu0 0.0
    %70 = vmatprep.subr.mxu0 0.0
    %71 = vmatpush1.xpose.msra.mxu0 0.0
    %72 = vmatprep.subr.mxu0 0.0
    %73 = vmatpush1.xpose.msra.mxu0 0.0
    %74 = vmatprep.subr.mxu0 0.0
    %75 = vmatpush1.xpose.msra.mxu0 0.0
    %76 = vmatprep.subr.mxu0 0.0
    %77 = vmatpush1.xpose.msra.mxu0 0.0
    %78 = vmatprep.subr.mxu0 0.0
    %79 = vmatpush1.xpose.msra.mxu0 0.0
    %80 = vmatprep.subr.mxu0 0.0
    %81 = vmatpush1.xpose.msra.mxu0 0.0
    %82 = vmatprep.subr.mxu0 0.0
    %83 = vmatpush1.xpose.msra.mxu0 0.0
    %84 = vmatprep.subr.mxu0 0.0
    %85 = vmatpush1.xpose.msra.mxu0 0.0
    %86 = vmatprep.subr.mxu0 0.0
    %87 = vmatpush1.xpose.msra.mxu0 0.0
    %88 = vmatprep.subr.mxu0 0.0
    %89 = vmatpush1.xpose.msra.mxu0 0.0
    %90 = vmatprep.subr.mxu0 0.0
    %91 = vmatpush1.xpose.msra.mxu0 0.0
    %92 = vmatprep.subr.mxu0 0.0
    %93 = vmatpush1.xpose.msra.mxu0 0.0
    %94 = vmatprep.subr.mxu0 0.0
    %95 = vmatpush1.xpose.msra.mxu0 0.0
    %96 = vmatprep.subr.mxu0 0.0
    %97 = vmatpush1.xpose.msra.mxu0 0.0
    %98 = vmatprep.subr.mxu0 0.0
    %99 = vmatpush1.xpose.msra.mxu0 0.0
    %100 = vmatprep.subr.mxu0 0.0
    %101 = vmatpush1.xpose.msra.mxu0 0.0
    %102 = vmatprep.subr.mxu0 0.0
    %103 = vmatpush1.xpose.msra.mxu0 0.0
    %104 = vmatprep.subr.mxu0 0.0
    %105 = vmatpush1.xpose.msra.mxu0 0.0
    %106 = vmatprep.subr.mxu0 0.0
    %107 = vmatpush1.xpose.msra.mxu0 0.0
    %108 = vmatprep.subr.mxu0 0.0
    %109 = vmatpush1.xpose.msra.mxu0 0.0
    %110 = vmatprep.subr.mxu0 0.0
    %111 = vmatpush1.xpose.msra.mxu0 0.0
    %112 = vmatprep.subr.mxu0 0.0
    %113 = vmatpush1.xpose.msra.mxu0 0.0
    %114 = vmatprep.subr.mxu0 0.0
    %115 = vmatpush1.xpose.msra.mxu0 0.0
    %116 = vmatprep.subr.mxu0 0.0
    %117 = vmatpush1.xpose.msra.mxu0 0.0
    %118 = vmatprep.mubr.f32.mxu0 0.0
    %119 = vmatmul.mubr.f32.gmra.mrb[0].mxu0 %v49
    %v120 = vpop.f32.mrb[0].mxu0
    %v121 = vadd.f32 0.0, %v120
    %v122 = vpop.f32.mrb[0].mxu0
    %123 = vdwg.mxu0
    %v124 = vmul.f32 %v121, 14.285714
    %s125 = smul.u32 0, 8
    %s126 = scalar_lea.vmem [#allocation8], %s125
    %v127 = vld [vmem:[%s126] sm:$0xff]
    %v128 = vmul.f32 %v45, %v127
    %v129 = vsel %vm47, %v128, 0.0
    %130 = vadd.xlane.f32.xlu0 %v129
    %v131 = vpop.xlane.xlu0 %130
    %v132 = vmul.f32 %v131, 14.285714
    %vm133 = vcmask 64512
    %v134 = vsel %vm133, %v124, -inf
    %135 = vmax.xlane.f32.xlu0 %v134
    %v136 = vpop.xlane.xlu0 %135
    %v137 = vsub.f32 %v124, %v136
    %v138 = vmul.f32 %v137, 1.442695
    %v139 = vpow.pop %v138
    %v140 = vsel %vm133, %v139, 0.0
    %141 = vadd.xlane.f32.xlu0 %v140
    %v142 = vpop.xlane.xlu0 %141
    %v143 = vld [vmem:[#allocation4] sm:$0x1]
    %v144 = vlog2.pop %v142
    %v145 = vmul.f32 %v144, 0.6931472
    %v146 = vadd.f32 %v136, %v145
    %v147 = vmul.f32 %v132, 2.0
    %v148 = vsub.f32 %v146, %v147
    %vm149 = vcmask 7168
    %v150 = vsel %vm149, %v148, 0.0
    %151 = vadd.xlane.f32.xlu0 %v150
    %v152 = vpop.xlane.xlu0 %151
    %v153 = vrot.slane %v152, 4
    %v154 = vadd.f32 %v152, %v153
    %v155 = vrot.slane %v154, 2
    %v156 = vadd.f32 %v154, %v155
    %v157 = vrot.slane %v156, 1
    %v158 = vadd.f32 %v156, %v157
    %s159 = vtos %v158
    %v160 = vstv %s159
    %v161 = vadd.f32 %v143, %v160
    %vm162 = vcmask 0
    %163 = vst.msk [vmem:[#allocation4] sm:$0x1] %vm162, %v161
    %v164 = vrot.slane %v134, 4
    %v165 = vmax.f32 %v134, %v164
    %v166 = vrot.slane %v165, 2
    %v167 = vmax.f32 %v165, %v166
    %v168 = vrot.slane %v167, 1
    %v169 = vmax.f32 %v167, %v168
    %v170 = vld [vmem:[#allocation2] sm:$0x1]
    %v171 = vmax.f32 %v170, %v169
    %v172 = vld [vmem:[#allocation3] sm:$0x1]
    %v173 = vsub.f32 %v170, %v171
    %v174 = vmul.f32 %v173, 1.442695
    %v175 = vpow.pop %v174
    %v176 = vmul.f32 %v172, %v175
    %v178 = vlaneseq
    %v179 = vshrl.u32 %v178, 7
    %v180 = vsub.s32 0, %v179
    %v181 = vrot.slane %v171, %v180
    %v183 = vsub.f32 %v124, %v181
    %v184 = vmul.f32 %v183, 1.442695
    %v185 = vpow.pop %v184
    %v186 = vsel %vm133, %v185, 0.0
    %v187 = vrot.slane %v186, 4
    %v188 = vadd.f32 %v186, %v187
    %v189 = vrot.slane %v188, 2
    %v190 = vadd.f32 %v188, %v189
    %v191 = vrot.slane %v190, 1
    %v192 = vadd.f32 %v190, %v191
    %v193 = vadd.f32 %v176, %v192
    %vm194 = vcmask 57344
    %195 = vst.msk [vmem:[#allocation3] sm:$0x1] %vm194, %v193
    %196 = vst.msk [vmem:[#allocation2] sm:$0x1] %vm194, %v171
    // Predicated region
    $region22: #{tpu_custom_call.1} parent=1 // pred_check
      %p197 = pneg %p36
    $region23: #{tpu_custom_call.1} parent=1 // pred_check_branch
      %199 = sbr.rel (%p197) target = $region25
    $region24: #{tpu_custom_call.1} parent=1 // pred_region
      %v200 = vld [vmem:[#allocation2] sm:$0x1]
      %v201 = vld [vmem:[#allocation3] sm:$0x1]
      %v202 = vlog2.pop %v201
      %v203 = vmul.f32 %v202, 0.6931472
      %v204 = vadd.f32 %v200, %v203
      %v205 = vld [vmem:[#allocation4] sm:$0x1]
      %v206 = vsel %vm194, %v204, 0.0
      %207 = vadd.xlane.f32.xlu0 %v206
      %v208 = vpop.xlane.xlu0 %207
      %v209 = vrot.slane %v208, 4
      %v210 = vadd.f32 %v208, %v209
      %v211 = vrot.slane %v210, 2
      %v212 = vadd.f32 %v210, %v211
      %v213 = vrot.slane %v212, 1
      %v214 = vadd.f32 %v212, %v213
      %s215 = vtos %v214
      %v216 = vstv %s215
      %v217 = vadd.f32 %v205, %v216
      %v218 = vrcp.pop 16.0
      %v219 = vmul.f32 %v217, %v218
      %220 = vst.msk [vmem:[#allocation10] sm:$0x1] %vm162, %v219
    $region25: #{tpu_custom_call.1} parent=1 // pred_fallthru
      _
    // Predicated region
    $region26: #{tpu_custom_call.1} parent=1 // pred_check
      _
    $region27: #{tpu_custom_call.1} parent=1 // pred_check_branch
      %222 = sbr.rel (0) target = $region29
    $region28: #{tpu_custom_call.1} parent=1 // pred_region
      %s224 = ssub.s32 16, 16
      %225 = vsyncadd [#allocation7], %s224
      %s227 = sshll.u32 [#allocation10], 4
      %s228 = int_to_ptr.vmem [resolvable:$true] %s227
      %230 = dma.vmem_to_hbm [thread:$0]  %s228, 16, %s2, [#allocation7]
    $region29: #{tpu_custom_call.1} parent=1 // pred_fallthru
      _
    // Predicated region
    $region30: #{tpu_custom_call.1} parent=1 // pred_check
      _
    $region31: #{tpu_custom_call.1} parent=1 // pred_check_branch
      %232 = sbr.rel (0) target = $region33
    $region32: #{tpu_custom_call.1} parent=1 // pred_region
      %233 = dma.done [#allocation7], 16
    $region33: #{tpu_custom_call.1} parent=1 // pred_fallthru
      _
    %234 = vsyncpa [#allocation6], 1
    %235 = vsyncpa [#allocation9], 1
    %236 = vsyncpa [#allocation7], 1

</llo_original>
